<compile_context>
chip_gen: v6e
topology: v6e:2x2x1
jax: 0.10.0
libtpu: 0.0.40
codegen_flags: <defaults>
</compile_context>

<pallas_src>
from typing import NamedTuple

import jax
import jax.numpy as jnp
from jax.experimental import pallas as pl
from jax.experimental.pallas import tpu as pltpu


def _round_up(x, m):
    return ((x + m - 1) // m) * m


def _sublane_multiple(dtype) -> int:
    # Minimum sublane tile for packed dtypes: f32 -> 8, bf16 -> 16, int8/fp8 -> 32.
    return {4: 8, 2: 16, 1: 32}[jnp.dtype(dtype).itemsize]


class RegressionHeadParams(NamedTuple):
    """Padded / pre-cast parameters. Build once with prepare_params(); reuse every call."""
    w1: jax.Array    # [H_pad, H_pad], compute dtype (stored [in, out]: x @ w1 == x @ W_dense.T)
    b1: jax.Array    # [1, H_pad], float32
    w2: jax.Array    # [H_pad, L_pad], compute dtype
    b2: jax.Array    # [1, L_pad], float32
    hidden: int      # H (unpadded)
    num_labels: int  # L (unpadded)


def prepare_params(w_dense, b_dense, w_out, b_out, *, compute_dtype=None):
    """Pad to lane-dense (multiples of 128) layout and cast ONCE, outside the hot path.

    w_dense: [H, H] stored as [in, out] (i.e. PyTorch weight.T), b_dense: [H] or [1, H],
    w_out:   [H, L] stored as [in, out],                          b_out:  [L] or [1, L].
    compute_dtype: MXU input dtype for x / W1 / W2 (e.g. jnp.bfloat16 on v6e/v7x).
    Accumulation, bias add and tanh always stay float32.
    """
    H = w_dense.shape[0]
    L = w_out.shape[1]
    if compute_dtype is None:
        # Conservative default: keep the parameter dtype (bit-exact vs. the f32
        # PyTorch module). On v6e/v7x pass compute_dtype=jnp.bfloat16: bf16 MXU
        # rate + half the weight DMA bytes (the dominant HBM traffic at
        # inference batch sizes).
        compute_dtype = w_dense.dtype
    H_pad = _round_up(H, 128)
    L_pad = _round_up(L, 128)
    # Zero padding keeps the valid output columns exact (padded weight rows are 0).
    w1 = jnp.pad(w_dense, ((0, H_pad - H), (0, H_pad - H))).astype(compute_dtype)
    w2 = jnp.pad(w_out, ((0, H_pad - H), (0, L_pad - L))).astype(compute_dtype)
    b1 = jnp.pad(jnp.reshape(b_dense, (1, H)), ((0, 0), (0, H_pad - H))).astype(jnp.float32)
    b2 = jnp.pad(jnp.reshape(b_out, (1, L)), ((0, 0), (0, L_pad - L))).astype(jnp.float32)
    return RegressionHeadParams(w1=w1, b1=b1, w2=w2, b2=b2, hidden=H, num_labels=L)


def regression_head_kernel(x_ref, w1_ref, b1_ref, w2_ref, b2_ref, o_ref):
    # TODO(synk): training-mode dropout masks are not implemented (eval = identity).
    x = x_ref[...]
    # dense: x @ W1 + b1  (MXU matmul, f32 accumulate; bias add + tanh in f32)
    h = jnp.dot(x, w1_ref[...], preferred_element_type=jnp.float32)
    h = jnp.tanh(h + b1_ref[...].astype(jnp.float32))
    # out_proj: h @ W2 + b2  (h cast to the MXU compute dtype; documented rounding)
    out = jnp.dot(h.astype(w2_ref.dtype), w2_ref[...],
                  preferred_element_type=jnp.float32)
    out = out + b2_ref[...].astype(jnp.float32)
    o_ref[...] = out.astype(o_ref.dtype)


def _pallas_forward(x, params, *, tb, out_dtype, single_buffer_weights):
    """x: [B, H_pad] (compute dtype) -> [B, L_pad] (out_dtype)."""
    B, H_pad = x.shape
    L_pad = params.w2.shape[1]
    grid = (pl.cdiv(B, tb),)

    def invariant_spec(shape):
        # Same block every grid step -> stays VMEM-resident across the batch loop.
        if single_buffer_weights:
            # Invariant block: no point double-buffering it (halves weight VMEM).
            return pl.BlockSpec(shape, lambda i: (0, 0), pipeline_mode=pl.Buffered(1))
        return pl.BlockSpec(shape, lambda i: (0, 0))

    w_itemsize = jnp.dtype(params.w1.dtype).itemsize
    x_itemsize = jnp.dtype(x.dtype).itemsize
    o_itemsize = jnp.dtype(out_dtype).itemsize
    w_bufs = 1 if single_buffer_weights else 2
    vmem_demand = (
        w_bufs * (H_pad * H_pad + H_pad * L_pad) * w_itemsize
        + w_bufs * (H_pad + L_pad) * 4
        + 2 * tb * H_pad * x_itemsize          # double-buffered activation tiles
        + 2 * tb * L_pad * o_itemsize          # double-buffered output tiles
    )
    # Explicit scoped-VMEM limit (defaults: 16 MiB v5e / 32 MiB v6e,v7x); cap at
    # 64 MiB so the same setting is valid on v7x's 64 MiB/TC VMEM.
    vmem_limit = int(min(max(int(vmem_demand * 1.25) + (2 << 20), 32 << 20), 64 << 20))

    cost = pl.CostEstimate(
        flops=2 * B * H_pad * (H_pad + L_pad),
        transcendentals=B * H_pad,
        bytes_accessed=(
            x.size * x_itemsize
            + (params.w1.size + params.w2.size) * w_itemsize
            + (params.b1.size + params.b2.size) * 4
            + B * L_pad * o_itemsize
        ),
    )

    return pl.pallas_call(
        regression_head_kernel,
        out_shape=jax.ShapeDtypeStruct((B, L_pad), out_dtype),
        grid_spec=pltpu.PrefetchScalarGridSpec(
            num_scalar_prefetch=0,
            grid=grid,
            in_specs=[
                # Activations: tiled along the (unpadded) batch axis; the last
                # block may be partial and Pallas masks the boundary.
                pl.BlockSpec((tb, H_pad), lambda i: (i, 0)),
                invariant_spec((H_pad, H_pad)),   # W1
                invariant_spec((1, H_pad)),       # b1
                invariant_spec((H_pad, L_pad)),   # W2
                invariant_spec((1, L_pad)),       # b2
            ],
            out_specs=pl.BlockSpec((tb, L_pad), lambda i: (i, 0)),
        ),
        compiler_params=pltpu.CompilerParams(
            # Independent batch tiles -> megacore sharding on v7x (harmless elsewhere).
            dimension_semantics=("parallel",),
            vmem_limit_bytes=vmem_limit,
        ),
        cost_estimate=cost,
    )(x, params.w1, params.b1, params.w2, params.b2)


def regression_head_apply(features, params, *, block_b=1024, use_pallas=None):
    """features: [B, H] -> [B, num_labels] in features.dtype.

    All weight preparation lives in prepare_params(); this function only touches
    the activations. use_pallas=None picks automatically (fused-XLA fallback for
    tiny head shapes where a custom call is pure launch/DMA latency).
    """
    B, H = features.shape
    if H != params.hidden:
        raise ValueError(f"features hidden dim {H} != params hidden dim {params.hidden}")
    L = params.num_labels
    H_pad = params.w1.shape[0]
    L_pad = params.w2.shape[1]
    compute_dtype = params.w1.dtype
    out_dtype = features.dtype

    if use_pallas is None:
        use_pallas = (H >= 128) and (B * H >= 64 * 1024)

    if not use_pallas:
        # Small-problem fallback: same math, let XLA fuse it.
        w1 = params.w1[:H, :H]
        w2 = params.w2[:H, :L]
        b1 = params.b1[:, :H]
        b2 = params.b2[:, :L]
        h = jnp.dot(features.astype(compute_dtype), w1,
                    preferred_element_type=jnp.float32)
        h = jnp.tanh(h + b1)
        out = jnp.dot(h.astype(compute_dtype), w2,
                      preferred_element_type=jnp.float32) + b2
        return out.astype(out_dtype)

    # Lane-pad / cast the activations only if needed (zero pad keeps the valid
    # output columns exact). The batch axis is NOT padded.
    if H_pad != H or features.dtype != jnp.dtype(compute_dtype):
        x = jnp.pad(features, ((0, 0), (0, H_pad - H))).astype(compute_dtype)
    else:
        x = features

    # Batch tile: multiple of the packed-sublane tile (8 f32 / 16 bf16 / 32 int8),
    # capped so the grid has >= 2 steps whenever possible (both v7x TensorCores).
    mult = _sublane_multiple(compute_dtype)
    tb = min(_round_up(block_b, mult), _round_up(B, mult))
    if B > mult and pl.cdiv(B, tb) < 2:
        tb = max(mult, _round_up(pl.cdiv(B, 2), mult))

    try:
        out_padded = _pallas_forward(x, params, tb=tb, out_dtype=out_dtype,
                                     single_buffer_weights=True)
    except Exception:
        # pl.Buffered(1) (single-buffered invariant weights) not supported by this
        # JAX/Mosaic build: retry with default double buffering (same semantics).
        out_padded = _pallas_forward(x, params, tb=tb, out_dtype=out_dtype,
                                     single_buffer_weights=False)
    return out_padded[:, :L]


def regression_head(features, w_dense, b_dense, w_out, b_out, *,
                    compute_dtype=None, block_b=1024, use_pallas=None):
    """One-shot convenience wrapper. For repeated calls, hoist prepare_params()."""
    params = prepare_params(w_dense, b_dense, w_out, b_out, compute_dtype=compute_dtype)
    return regression_head_apply(features, params, block_b=block_b, use_pallas=use_pallas)


def reference(features, w_dense, b_dense, w_out, b_out):
    h = jnp.tanh(features @ w_dense + jnp.reshape(b_dense, (1, -1)))
    return h @ w_out + jnp.reshape(b_out, (1, -1))


if __name__ == "__main__":
    def make_case(key, B, H, L):
        k_x, k_w1, k_b1, k_w2, k_b2 = jax.random.split(key, 5)
        bound = 1.0 / jnp.sqrt(H)
        features = jax.random.normal(k_x, (B, H), dtype=jnp.float32)
        # PyTorch Linear stores weight as [out, in]; we store the transpose [in, out].
        w_dense = jax.random.uniform(k_w1, (H, H), minval=-bound, maxval=bound, dtype=jnp.float32)
        b_dense = jax.random.uniform(k_b1, (H,), minval=-bound, maxval=bound, dtype=jnp.float32)
        w_out = jax.random.uniform(k_w2, (H, L), minval=-bound, maxval=bound, dtype=jnp.float32)
        b_out = jax.random.uniform(k_b2, (L,), minval=-bound, maxval=bound, dtype=jnp.float32)
        return features, w_dense, b_dense, w_out, b_out

    key = jax.random.PRNGKey(0)
    k1, k2 = jax.random.split(key)

    # --- Case 1: nominal head config (hidden=32, num_labels=4, batch=8) -----------
    f, w1, b1, w2, b2 = make_case(k1, B=8, H=32, L=4)
    ref = reference(f, w1, b1, w2, b2)
    params_f32 = prepare_params(w1, b1, w2, b2)   # padded/cast once, reused below

    # Auto path: tiny shape -> fused-XLA fallback (no pallas_call).
    out_auto = jax.block_until_ready(regression_head_apply(f, params_f32))
    assert out_auto.shape == (8, 4)
    assert jnp.allclose(out_auto, ref, atol=1e-5, rtol=1e-5), "small/auto mismatch vs reference"

    # Forced Pallas path (exercises the kernel at the nominal shape, f32 exact).
    out_pl = jax.block_until_ready(regression_head_apply(f, params_f32, use_pallas=True))
    assert out_pl.shape == (8, 4)
    assert jnp.allclose(out_pl, ref, atol=1e-5, rtol=1e-5), "small/pallas f32 mismatch vs reference"

    # --- Case 2: larger batch/hidden; multi-step grid with a partial boundary block
    f2, w1b, b1b, w2b, b2b = make_case(k2, B=300, H=256, L=8)
    ref2 = reference(f2, w1b, b1b, w2b, b2b)

    p2_f32 = prepare_params(w1b, b1b, w2b, b2b)
    out2 = jax.block_until_ready(regression_head_apply(f2, p2_f32))       # auto -> Pallas
    assert out2.shape == (300, 8)
    assert jnp.allclose(out2, ref2, atol=1e-2, rtol=1e-2), "medium/pallas f32 mismatch vs reference"

    # bf16 MXU path (v6e/v7x rate, half the weight bytes); f32 accumulation bounds error.
    p2_bf16 = prepare_params(w1b, b1b, w2b, b2b, compute_dtype=jnp.bfloat16)
    out2_bf16 = jax.block_until_ready(regression_head_apply(f2, p2_bf16))
    assert out2_bf16.shape == (300, 8)
    assert jnp.allclose(out2_bf16, ref2, atol=5e-2, rtol=5e-2), "medium/pallas bf16 mismatch vs reference"

    print("KERNEL_OK")
</pallas_src>

<mosaic_0001>
module attributes {stable_mosaic.version = 11 : i64} {
  func.func @regression_head_kernel(%arg0: i32, %arg1: memref<8x128xf32, #tpu.memory_space<vmem>>, %arg2: memref<128x128xf32, #tpu.memory_space<vmem>>, %arg3: memref<1x128xf32, #tpu.memory_space<vmem>>, %arg4: memref<128x128xf32, #tpu.memory_space<vmem>>, %arg5: memref<1x128xf32, #tpu.memory_space<vmem>>, %arg6: memref<8x128xf32, #tpu.memory_space<vmem>>) attributes {dimension_semantics = [#tpu.dimension_semantics<parallel>], iteration_bounds = array<i64: 1>, scalar_prefetch = 0 : i64, scratch_operands = 0 : i64, tpu.core_type = #tpu.core_type<tc>, window_params = [{transform_indices = @transform_0, window_bounds = array<i64: 8, 128>}, {pipeline_mode = #tpu.pipeline_mode<synchronous>, transform_indices = @transform_1, window_bounds = array<i64: 128, 128>}, {pipeline_mode = #tpu.pipeline_mode<synchronous>, transform_indices = @transform_2, window_bounds = array<i64: 1, 128>}, {pipeline_mode = #tpu.pipeline_mode<synchronous>, transform_indices = @transform_3, window_bounds = array<i64: 128, 128>}, {pipeline_mode = #tpu.pipeline_mode<synchronous>, transform_indices = @transform_4, window_bounds = array<i64: 1, 128>}, {transform_indices = @transform_5, window_bounds = array<i64: 8, 128>}]} {
    %c0 = arith.constant 0 : index
    %c0_0 = arith.constant 0 : index
    %0 = vector.load %arg1[%c0, %c0_0] : memref<8x128xf32, #tpu.memory_space<vmem>>, vector<8x128xf32>
    %c0_1 = arith.constant 0 : index
    %c0_2 = arith.constant 0 : index
    %1 = vector.load %arg2[%c0_1, %c0_2] : memref<128x128xf32, #tpu.memory_space<vmem>>, vector<128x128xf32>
    %cst = arith.constant dense<0.000000e+00> : vector<8x128xf32>
    %2 = tpu.matmul %0, %1, %cst {dimension_numbers = #tpu.dot_dimension_numbers<[1], [0], [0], [1], [0, 0, 1, 1], [], []>} : vector<8x128xf32>, vector<128x128xf32>, vector<8x128xf32> -> vector<8x128xf32>
    %c0_3 = arith.constant 0 : index
    %c0_4 = arith.constant 0 : index
    %3 = vector.load %arg3[%c0_3, %c0_4] : memref<1x128xf32, #tpu.memory_space<vmem>>, vector<1x128xf32>
    %4 = vector.broadcast %3 : vector<1x128xf32> to vector<8x128xf32>
    %5 = arith.addf %2, %4 : vector<8x128xf32>
    %6 = math.tanh %5 : vector<8x128xf32>
    %c0_5 = arith.constant 0 : index
    %c0_6 = arith.constant 0 : index
    %7 = vector.load %arg4[%c0_5, %c0_6] : memref<128x128xf32, #tpu.memory_space<vmem>>, vector<128x128xf32>
    %cst_7 = arith.constant dense<0.000000e+00> : vector<8x128xf32>
    %8 = tpu.matmul %6, %7, %cst_7 {dimension_numbers = #tpu.dot_dimension_numbers<[1], [0], [0], [1], [0, 0, 1, 1], [], []>} : vector<8x128xf32>, vector<128x128xf32>, vector<8x128xf32> -> vector<8x128xf32>
    %c0_8 = arith.constant 0 : index
    %c0_9 = arith.constant 0 : index
    %9 = vector.load %arg5[%c0_8, %c0_9] : memref<1x128xf32, #tpu.memory_space<vmem>>, vector<1x128xf32>
    %10 = vector.broadcast %9 : vector<1x128xf32> to vector<8x128xf32>
    %11 = arith.addf %8, %10 : vector<8x128xf32>
    %c0_10 = arith.constant 0 : index
    %c0_11 = arith.constant 0 : index
    %12 = vector.load %arg6[%c0_10, %c0_11] : memref<8x128xf32, #tpu.memory_space<vmem>>, vector<8x128xf32>
    tpu.vector_store %arg6[%c0_10, %c0_11], %11 {strides = array<i32>} : memref<8x128xf32, #tpu.memory_space<vmem>>, vector<8x128xf32>,
    return
  }
  func.func @transform_0(%arg0: i32) -> (i32, i32) {
    %c0_i32 = arith.constant 0 : i32
    %c0_i32_0 = arith.constant 0 : i32
    return %arg0, %c0_i32 : i32, i32
  }
  func.func @transform_1(%arg0: i32) -> (i32, i32) {
    %c0_i32 = arith.constant 0 : i32
    %c0_i32_0 = arith.constant 0 : i32
    %c0_i32_1 = arith.constant 0 : i32
    return %c0_i32, %c0_i32_0 : i32, i32
  }
  func.func @transform_2(%arg0: i32) -> (i32, i32) {
    %c0_i32 = arith.constant 0 : i32
    %c0_i32_0 = arith.constant 0 : i32
    %c0_i32_1 = arith.constant 0 : i32
    return %c0_i32, %c0_i32_0 : i32, i32
  }
  func.func @transform_3(%arg0: i32) -> (i32, i32) {
    %c0_i32 = arith.constant 0 : i32
    %c0_i32_0 = arith.constant 0 : i32
    %c0_i32_1 = arith.constant 0 : i32
    return %c0_i32, %c0_i32_0 : i32, i32
  }
  func.func @transform_4(%arg0: i32) -> (i32, i32) {
    %c0_i32 = arith.constant 0 : i32
    %c0_i32_0 = arith.constant 0 : i32
    %c0_i32_1 = arith.constant 0 : i32
    return %c0_i32, %c0_i32_0 : i32, i32
  }
  func.func @transform_5(%arg0: i32) -> (i32, i32) {
    %c0_i32 = arith.constant 0 : i32
    %c0_i32_0 = arith.constant 0 : i32
    return %arg0, %c0_i32 : i32, i32
  }
}

module attributes {stable_mosaic.version = 11 : i64} {
  func.func @regression_head_kernel(%arg0: i32, %arg1: memref<8x128xf32, #tpu.memory_space<vmem>>, %arg2: memref<128x128xf32, #tpu.memory_space<vmem>>, %arg3: memref<1x128xf32, #tpu.memory_space<vmem>>, %arg4: memref<128x128xf32, #tpu.memory_space<vmem>>, %arg5: memref<1x128xf32, #tpu.memory_space<vmem>>, %arg6: memref<8x128xf32, #tpu.memory_space<vmem>>) attributes {dimension_semantics = [#tpu.dimension_semantics<parallel>], iteration_bounds = array<i64: 1>, scalar_prefetch = 0 : i64, scratch_operands = 0 : i64, tpu.core_type = #tpu.core_type<tc>, window_params = [{transform_indices = @transform_0, window_bounds = array<i64: 8, 128>}, {pipeline_mode = #tpu.pipeline_mode<synchronous>, transform_indices = @transform_1, window_bounds = array<i64: 128, 128>}, {pipeline_mode = #tpu.pipeline_mode<synchronous>, transform_indices = @transform_2, window_bounds = array<i64: 1, 128>}, {pipeline_mode = #tpu.pipeline_mode<synchronous>, transform_indices = @transform_3, window_bounds = array<i64: 128, 128>}, {pipeline_mode = #tpu.pipeline_mode<synchronous>, transform_indices = @transform_4, window_bounds = array<i64: 1, 128>}, {transform_indices = @transform_5, window_bounds = array<i64: 8, 128>}]} {
    %c0 = arith.constant 0 : index
    %c0_0 = arith.constant 0 : index
    %0 = vector.load %arg1[%c0, %c0_0] : memref<8x128xf32, #tpu.memory_space<vmem>>, vector<8x128xf32>
    %c0_1 = arith.constant 0 : index
    %c0_2 = arith.constant 0 : index
    %1 = vector.load %arg2[%c0_1, %c0_2] : memref<128x128xf32, #tpu.memory_space<vmem>>, vector<128x128xf32>
    %cst = arith.constant dense<0.000000e+00> : vector<8x128xf32>
    %2 = tpu.matmul %0, %1, %cst {dimension_numbers = #tpu.dot_dimension_numbers<[1], [0], [0], [1], [0, 0, 1, 1], [], []>} : vector<8x128xf32>, vector<128x128xf32>, vector<8x128xf32> -> vector<8x128xf32>
    %c0_3 = arith.constant 0 : index
    %c0_4 = arith.constant 0 : index
    %3 = vector.load %arg3[%c0_3, %c0_4] : memref<1x128xf32, #tpu.memory_space<vmem>>, vector<1x128xf32>
    %4 = vector.broadcast %3 : vector<1x128xf32> to vector<8x128xf32>
    %5 = arith.addf %2, %4 : vector<8x128xf32>
    %6 = math.tanh %5 : vector<8x128xf32>
    %c0_5 = arith.constant 0 : index
    %c0_6 = arith.constant 0 : index
    %7 = vector.load %arg4[%c0_5, %c0_6] : memref<128x128xf32, #tpu.memory_space<vmem>>, vector<128x128xf32>
    %cst_7 = arith.constant dense<0.000000e+00> : vector<8x128xf32>
    %8 = tpu.matmul %6, %7, %cst_7 {dimension_numbers = #tpu.dot_dimension_numbers<[1], [0], [0], [1], [0, 0, 1, 1], [], []>} : vector<8x128xf32>, vector<128x128xf32>, vector<8x128xf32> -> vector<8x128xf32>
    %c0_8 = arith.constant 0 : index
    %c0_9 = arith.constant 0 : index
    %9 = vector.load %arg5[%c0_8, %c0_9] : memref<1x128xf32, #tpu.memory_space<vmem>>, vector<1x128xf32>
    %10 = vector.broadcast %9 : vector<1x128xf32> to vector<8x128xf32>
    %11 = arith.addf %8, %10 : vector<8x128xf32>
    %c0_10 = arith.constant 0 : index
    %c0_11 = arith.constant 0 : index
    %12 = vector.load %arg6[%c0_10, %c0_11] : memref<8x128xf32, #tpu.memory_space<vmem>>, vector<8x128xf32>
    tpu.vector_store %arg6[%c0_10, %c0_11], %11 {strides = array<i32>} : memref<8x128xf32, #tpu.memory_space<vmem>>, vector<8x128xf32>,
    return
  }
  func.func @transform_0(%arg0: i32) -> (i32, i32) {
    %c0_i32 = arith.constant 0 : i32
    %c0_i32_0 = arith.constant 0 : i32
    return %arg0, %c0_i32 : i32, i32
  }
  func.func @transform_1(%arg0: i32) -> (i32, i32) {
    %c0_i32 = arith.constant 0 : i32
    %c0_i32_0 = arith.constant 0 : i32
    %c0_i32_1 = arith.constant 0 : i32
    return %c0_i32, %c0_i32_0 : i32, i32
  }
  func.func @transform_2(%arg0: i32) -> (i32, i32) {
    %c0_i32 = arith.constant 0 : i32
    %c0_i32_0 = arith.constant 0 : i32
    %c0_i32_1 = arith.constant 0 : i32
    return %c0_i32, %c0_i32_0 : i32, i32
  }
  func.func @transform_3(%arg0: i32) -> (i32, i32) {
    %c0_i32 = arith.constant 0 : i32
    %c0_i32_0 = arith.constant 0 : i32
    %c0_i32_1 = arith.constant 0 : i32
    return %c0_i32, %c0_i32_0 : i32, i32
  }
  func.func @transform_4(%arg0: i32) -> (i32, i32) {
    %c0_i32 = arith.constant 0 : i32
    %c0_i32_0 = arith.constant 0 : i32
    %c0_i32_1 = arith.constant 0 : i32
    return %c0_i32, %c0_i32_0 : i32, i32
  }
  func.func @transform_5(%arg0: i32) -> (i32, i32) {
    %c0_i32 = arith.constant 0 : i32
    %c0_i32_0 = arith.constant 0 : i32
    return %arg0, %c0_i32 : i32, i32
  }
}

</mosaic_0001>

<llo_original>
// kernel: tpu_custom_call.1
$region0: #{tpu_custom_call.1}
  #allocation0 [shape = 'u32[]', space=smem, size = 0x4, offset = 0x4, fixed_abs, tag = 'smem constant byte address 0x4 - core index']
  #allocation1 [shape = 'u32[144,128]{1,0:T(1,128)}', space=vmem, size = 0x12000, scoped, tag = 'internal scratch']
  %s0 = inlined_call_operand.hbm [shape: f32[8,128], index: 0, kind: input, shape index: {}]
  %s1 = inlined_call_operand.hbm [shape: f32[128,128], index: 1, kind: input, shape index: {}]
  %s2 = inlined_call_operand.vmem [shape: f32[1,128], index: 2, kind: input, shape index: {}]
  %s3 = inlined_call_operand.hbm [shape: f32[128,128], index: 3, kind: input, shape index: {}]
  %s4 = inlined_call_operand.vmem [shape: f32[1,128], index: 4, kind: input, shape index: {}]
  %s5 = inlined_call_operand.hbm [shape: f32[8,128], index: 5, kind: output, shape index: {}]
  %s6 = sld [smem:[#allocation0]]
  $region42: #{tpu_custom_call.1} parent=0
    _
  %s8 = ssub.s32 1, %s6
  %s9 = scalar_select 0, %s8, %s6
  $region1: #{tpu_custom_call.1} parent=0
    #allocation2 [shape = 'u8[4096]{0}', space=vmem, size = 0x1000, scoped, tag = 'input window, operand 0, single buffered']
    #allocation3 [shape = 's32[1]{0}', space=sflag, size = 0x4, scoped, tag = 'scoped memory for tpu_custom_call.1']
    #allocation4 [shape = 's32[1]{0}', space=sflag, size = 0x4, scoped, tag = 'scoped memory for tpu_custom_call.1']
    #allocation5 [shape = 'u8[65536]{0}', space=vmem, size = 0x10000, scoped, tag = 'input window, operand 1, single buffered']
    #allocation6 [shape = 's32[1]{0}', space=sflag, size = 0x4, scoped, tag = 'scoped memory for tpu_custom_call.1']
    #allocation7 [shape = 'u8[65536]{0}', space=vmem, size = 0x10000, scoped, tag = 'input window, operand 3, single buffered']
    #allocation8 [shape = 'u8[4096]{0}', space=vmem, size = 0x1000, scoped, tag = 'output window, operand 0, single buffered']
    %10 = vsyncpa [#allocation3], 0
    %11 = vsyncpa [#allocation6], 0
    %12 = vsyncpa [#allocation4], 0
    // Predicated region
    $region2: #{tpu_custom_call.1} parent=1 // pred_check
      _
    $region3: #{tpu_custom_call.1} parent=1 // pred_check_branch
      %14 = sbr.rel (0) target = $region5
    $region4: #{tpu_custom_call.1} parent=1 // pred_region
      %s16 = ssub.s32 128, 128
      %17 = vsyncadd [#allocation3], %s16
      %s19 = sshll.u32 [#allocation2], 4
      %s20 = int_to_ptr.vmem [resolvable:$true] %s19
      %22 = dma.hbm_to_vmem [thread:$0]  %s0, 128, %s20, [#allocation3]
    $region5: #{tpu_custom_call.1} parent=1 // pred_fallthru
      _
    // Predicated region
    $region6: #{tpu_custom_call.1} parent=1 // pred_check
      _
    $region7: #{tpu_custom_call.1} parent=1 // pred_check_branch
      %24 = sbr.rel (0) target = $region9
    $region8: #{tpu_custom_call.1} parent=1 // pred_region
      %s26 = ssub.s32 2048, 2048
      %27 = vsyncadd [#allocation6], %s26
      %s28 = sshll.u32 [#allocation5], 4
      %s29 = int_to_ptr.vmem [resolvable:$true] %s28
      %34 = dma.hbm_to_vmem [thread:$0]  %s1, 2048, %s29, [#allocation6], 128, 128, 8
    $region9: #{tpu_custom_call.1} parent=1 // pred_fallthru
      _
    // Predicated region
    $region10: #{tpu_custom_call.1} parent=1 // pred_check
      _
    $region11: #{tpu_custom_call.1} parent=1 // pred_check_branch
      %36 = sbr.rel (0) target = $region13
    $region12: #{tpu_custom_call.1} parent=1 // pred_region
      _
    $region13: #{tpu_custom_call.1} parent=1 // pred_fallthru
      _
    // Predicated region
    $region14: #{tpu_custom_call.1} parent=1 // pred_check
      _
    $region15: #{tpu_custom_call.1} parent=1 // pred_check_branch
      %38 = sbr.rel (0) target = $region17
    $region16: #{tpu_custom_call.1} parent=1 // pred_region
      %s40 = ssub.s32 2048, 2048
      %41 = vsyncadd [#allocation6], %s40
      %s42 = sshll.u32 [#allocation7], 4
      %s43 = int_to_ptr.vmem [resolvable:$true] %s42
      %48 = dma.hbm_to_vmem [thread:$0]  %s3, 2048, %s43, [#allocation6], 128, 128, 8
    $region17: #{tpu_custom_call.1} parent=1 // pred_fallthru
      _
    // Predicated region
    $region18: #{tpu_custom_call.1} parent=1 // pred_check
      _
    $region19: #{tpu_custom_call.1} parent=1 // pred_check_branch
      %50 = sbr.rel (0) target = $region21
    $region20: #{tpu_custom_call.1} parent=1 // pred_region
      _
    $region21: #{tpu_custom_call.1} parent=1 // pred_fallthru
      _
    // Predicated region
    $region22: #{tpu_custom_call.1} parent=1 // pred_check
      _
    $region23: #{tpu_custom_call.1} parent=1 // pred_check_branch
      %52 = sbr.rel (0) target = $region25
    $region24: #{tpu_custom_call.1} parent=1 // pred_region
      %53 = dma.done [#allocation3], 128
    $region25: #{tpu_custom_call.1} parent=1 // pred_fallthru
      _
    // Predicated region
    $region26: #{tpu_custom_call.1} parent=1 // pred_check
      _
    $region27: #{tpu_custom_call.1} parent=1 // pred_check_branch
      %55 = sbr.rel (0) target = $region29
    $region28: #{tpu_custom_call.1} parent=1 // pred_region
      %56 = dma.done [#allocation6], 2048
    $region29: #{tpu_custom_call.1} parent=1 // pred_fallthru
      _
    // Predicated region
    $region30: #{tpu_custom_call.1} parent=1 // pred_check
      _
    $region31: #{tpu_custom_call.1} parent=1 // pred_check_branch
      %58 = sbr.rel (0) target = $region33
    $region32: #{tpu_custom_call.1} parent=1 // pred_region
      %59 = dma.done [#allocation6], 2048
    $region33: #{tpu_custom_call.1} parent=1 // pred_fallthru
      _
    %v60 = vld [vmem:[#allocation2] sm:$0xff]
    %v61 = vld [vmem:[#allocation5] sm:$0xff]
    %v62 = vld [vmem:[#allocation5 + $0x8] sm:$0xff]
    %v63 = vld [vmem:[#allocation5 + $0x10] sm:$0xff]
    %v64 = vld [vmem:[#allocation5 + $0x18] sm:$0xff]
    %v65 = vld [vmem:[#allocation5 + $0x20] sm:$0xff]
    %v66 = vld [vmem:[#allocation5 + $0x28] sm:$0xff]
    %v67 = vld [vmem:[#allocation5 + $0x30] sm:$0xff]
    %v68 = vld [vmem:[#allocation5 + $0x38] sm:$0xff]
    %v69 = vld [vmem:[#allocation5 + $0x40] sm:$0xff]
    %v70 = vld [vmem:[#allocation5 + $0x48] sm:$0xff]
    %v71 = vld [vmem:[#allocation5 + $0x50] sm:$0xff]
    %v72 = vld [vmem:[#allocation5 + $0x58] sm:$0xff]
    %v73 = vld [vmem:[#allocation5 + $0x60] sm:$0xff]
    %v74 = vld [vmem:[#allocation5 + $0x68] sm:$0xff]
    %v75 = vld [vmem:[#allocation5 + $0x70] sm:$0xff]
    %v76 = vld [vmem:[#allocation5 + $0x78] sm:$0xff]
    %v77 = vld [vmem:[%s2] sm:$0x1]
    %v79 = vlaneseq
    %v80 = vshrl.u32 %v79, 7
    %v81 = vsub.s32 0, %v80
    %v82 = vrot.slane %v77, %v81
    %84 = vmatprep.subr.mxu0 0.0
    %85 = vmatpush1.msra.mxu0 %v76
    %86 = vmatprep.subr.mxu0 0.0
    %87 = vmatpush1.msra.mxu0 %v75
    %88 = vmatprep.subr.mxu0 0.0
    %89 = vmatpush1.msra.mxu0 %v74
    %90 = vmatprep.subr.mxu0 0.0
    %91 = vmatpush1.msra.mxu0 %v73
    %92 = vmatprep.subr.mxu0 0.0
    %93 = vmatpush1.msra.mxu0 %v72
    %94 = vmatprep.subr.mxu0 0.0
    %95 = vmatpush1.msra.mxu0 %v71
    %96 = vmatprep.subr.mxu0 0.0
    %97 = vmatpush1.msra.mxu0 %v70
    %98 = vmatprep.subr.mxu0 0.0
    %99 = vmatpush1.msra.mxu0 %v69
    %100 = vmatprep.subr.mxu0 0.0
    %101 = vmatpush1.msra.mxu0 %v68
    %102 = vmatprep.subr.mxu0 0.0
    %103 = vmatpush1.msra.mxu0 %v67
    %104 = vmatprep.subr.mxu0 0.0
    %105 = vmatpush1.msra.mxu0 %v66
    %106 = vmatprep.subr.mxu0 0.0
    %107 = vmatpush1.msra.mxu0 %v65
    %108 = vmatprep.subr.mxu0 0.0
    %109 = vmatpush1.msra.mxu0 %v64
    %110 = vmatprep.subr.mxu0 0.0
    %111 = vmatpush1.msra.mxu0 %v63
    %112 = vmatprep.subr.mxu0 0.0
    %113 = vmatpush1.msra.mxu0 %v62
    %114 = vmatprep.subr.mxu0 0.0
    %115 = vmatpush1.msra.mxu0 %v61
    %116 = vmatprep.subr.mxu0 0.0
    %117 = vmatpush2.msra.mxu0 0.0
    %118 = vmatprep.subr.mxu0 0.0
    %119 = vmatpush2.msra.mxu0 0.0
    %120 = vmatprep.subr.mxu0 0.0
    %121 = vmatpush2.msra.mxu0 0.0
    %122 = vmatprep.subr.mxu0 0.0
    %123 = vmatpush2.msra.mxu0 0.0
    %124 = vmatprep.subr.mxu0 0.0
    %125 = vmatpush2.msra.mxu0 0.0
    %126 = vmatprep.subr.mxu0 0.0
    %127 = vmatpush2.msra.mxu0 0.0
    %128 = vmatprep.subr.mxu0 0.0
    %129 = vmatpush2.msra.mxu0 0.0
    %130 = vmatprep.subr.mxu0 0.0
    %131 = vmatpush2.msra.mxu0 0.0
    %132 = vmatprep.subr.mxu0 0.0
    %133 = vmatpush2.msra.mxu0 0.0
    %134 = vmatprep.subr.mxu0 0.0
    %135 = vmatpush2.msra.mxu0 0.0
    %136 = vmatprep.subr.mxu0 0.0
    %137 = vmatpush2.msra.mxu0 0.0
    %138 = vmatprep.subr.mxu0 0.0
    %139 = vmatpush2.msra.mxu0 0.0
    %140 = vmatprep.subr.mxu0 0.0
    %141 = vmatpush2.msra.mxu0 0.0
    %142 = vmatprep.subr.mxu0 0.0
    %143 = vmatpush2.msra.mxu0 0.0
    %144 = vmatprep.subr.mxu0 0.0
    %145 = vmatpush2.msra.mxu0 0.0
    %146 = vmatprep.subr.mxu0 0.0
    %147 = vmatpush2.msra.mxu0 0.0
    %148 = vmatprep.mubr.f32.mxu0 0.0
    %149 = vmatmul.mubr.f32.gmra.mxu0 %v60
    %v150 = vpop.f32.mrf.mxu0
    %v151 = vadd.f32 %v82, %v150
    %v152 = vpop.f32.mrf.mxu0
    %153 = vdwg.mxu0
    %v154 = vtanh.pop %v151
    %v155 = vld [vmem:[#allocation7] sm:$0xff]
    %v156 = vld [vmem:[#allocation7 + $0x8] sm:$0xff]
    %v157 = vld [vmem:[#allocation7 + $0x10] sm:$0xff]
    %v158 = vld [vmem:[#allocation7 + $0x18] sm:$0xff]
    %v159 = vld [vmem:[#allocation7 + $0x20] sm:$0xff]
    %v160 = vld [vmem:[#allocation7 + $0x28] sm:$0xff]
    %v161 = vld [vmem:[#allocation7 + $0x30] sm:$0xff]
    %v162 = vld [vmem:[#allocation7 + $0x38] sm:$0xff]
    %v163 = vld [vmem:[#allocation7 + $0x40] sm:$0xff]
    %v164 = vld [vmem:[#allocation7 + $0x48] sm:$0xff]
    %v165 = vld [vmem:[#allocation7 + $0x50] sm:$0xff]
    %v166 = vld [vmem:[#allocation7 + $0x58] sm:$0xff]
    %v167 = vld [vmem:[#allocation7 + $0x60] sm:$0xff]
    %v168 = vld [vmem:[#allocation7 + $0x68] sm:$0xff]
    %v169 = vld [vmem:[#allocation7 + $0x70] sm:$0xff]
    %v170 = vld [vmem:[#allocation7 + $0x78] sm:$0xff]
    %v171 = vld [vmem:[%s4] sm:$0x1]
    %v173 = vlaneseq
    %v174 = vshrl.u32 %v173, 7
    %v175 = vsub.s32 0, %v174
    %v176 = vrot.slane %v171, %v175
    %178 = vmatprep.subr.mxu0 0.0
    %179 = vmatpush1.msra.mxu0 %v170
    %180 = vmatprep.subr.mxu0 0.0
    %181 = vmatpush1.msra.mxu0 %v169
    %182 = vmatprep.subr.mxu0 0.0
    %183 = vmatpush1.msra.mxu0 %v168
    %184 = vmatprep.subr.mxu0 0.0
    %185 = vmatpush1.msra.mxu0 %v167
    %186 = vmatprep.subr.mxu0 0.0
    %187 = vmatpush1.msra.mxu0 %v166
    %188 = vmatprep.subr.mxu0 0.0
    %189 = vmatpush1.msra.mxu0 %v165
    %190 = vmatprep.subr.mxu0 0.0
    %191 = vmatpush1.msra.mxu0 %v164
    %192 = vmatprep.subr.mxu0 0.0
    %193 = vmatpush1.msra.mxu0 %v163
    %194 = vmatprep.subr.mxu0 0.0
    %195 = vmatpush1.msra.mxu0 %v162
    %196 = vmatprep.subr.mxu0 0.0
    %197 = vmatpush1.msra.mxu0 %v161
    %198 = vmatprep.subr.mxu0 0.0
    %199 = vmatpush1.msra.mxu0 %v160
    %200 = vmatprep.subr.mxu0 0.0
    %201 = vmatpush1.msra.mxu0 %v159
    %202 = vmatprep.subr.mxu0 0.0
    %203 = vmatpush1.msra.mxu0 %v158
    %204 = vmatprep.subr.mxu0 0.0
    %205 = vmatpush1.msra.mxu0 %v157
    %206 = vmatprep.subr.mxu0 0.0
    %207 = vmatpush1.msra.mxu0 %v156
    %208 = vmatprep.subr.mxu0 0.0
    %209 = vmatpush1.msra.mxu0 %v155
    %210 = vmatprep.subr.mxu0 0.0
    %211 = vmatpush2.msra.mxu0 0.0
    %212 = vmatprep.subr.mxu0 0.0
    %213 = vmatpush2.msra.mxu0 0.0
    %214 = vmatprep.subr.mxu0 0.0
    %215 = vmatpush2.msra.mxu0 0.0
    %216 = vmatprep.subr.mxu0 0.0
    %217 = vmatpush2.msra.mxu0 0.0
    %218 = vmatprep.subr.mxu0 0.0
    %219 = vmatpush2.msra.mxu0 0.0
    %220 = vmatprep.subr.mxu0 0.0
    %221 = vmatpush2.msra.mxu0 0.0
    %222 = vmatprep.subr.mxu0 0.0
    %223 = vmatpush2.msra.mxu0 0.0
    %224 = vmatprep.subr.mxu0 0.0
    %225 = vmatpush2.msra.mxu0 0.0
    %226 = vmatprep.subr.mxu0 0.0
    %227 = vmatpush2.msra.mxu0 0.0
    %228 = vmatprep.subr.mxu0 0.0
    %229 = vmatpush2.msra.mxu0 0.0
    %230 = vmatprep.subr.mxu0 0.0
    %231 = vmatpush2.msra.mxu0 0.0
    %232 = vmatprep.subr.mxu0 0.0
    %233 = vmatpush2.msra.mxu0 0.0
    %234 = vmatprep.subr.mxu0 0.0
    %235 = vmatpush2.msra.mxu0 0.0
    %236 = vmatprep.subr.mxu0 0.0
    %237 = vmatpush2.msra.mxu0 0.0
    %238 = vmatprep.subr.mxu0 0.0
    %239 = vmatpush2.msra.mxu0 0.0
    %240 = vmatprep.subr.mxu0 0.0
    %241 = vmatpush2.msra.mxu0 0.0
    %242 = vmatprep.mubr.f32.mxu0 0.0
    %243 = vmatmul.mubr.f32.gmra.mxu0 %v154
    %v244 = vpop.f32.mrf.mxu0
    %v245 = vadd.f32 %v176, %v244
    %v246 = vpop.f32.mrf.mxu0
    %247 = vdwg.mxu0
    %248 = vst [vmem:[#allocation8] sm:$0xff] %v245
    // Predicated region
    $region34: #{tpu_custom_call.1} parent=1 // pred_check
      _
    $region35: #{tpu_custom_call.1} parent=1 // pred_check_branch
      %250 = sbr.rel (0) target = $region37
    $region36: #{tpu_custom_call.1} parent=1 // pred_region
      %s252 = ssub.s32 128, 128
      %253 = vsyncadd [#allocation4], %s252
      %s255 = sshll.u32 [#allocation8], 4
      %s256 = int_to_ptr.vmem [resolvable:$true] %s255
      %258 = dma.vmem_to_hbm [thread:$0]  %s256, 128, %s5, [#allocation4]
    $region37: #{tpu_custom_call.1} parent=1 // pred_fallthru
      _
    // Predicated region
    $region38: #{tpu_custom_call.1} parent=1 // pred_check
      _
    $region39: #{tpu_custom_call.1} parent=1 // pred_check_branch
      %260 = sbr.rel (0) target = $region41
    $region40: #{tpu_custom_call.1} parent=1 // pred_region
      %261 = dma.done [#allocation4], 128
    $region41: #{tpu_custom_call.1} parent=1 // pred_fallthru
      _
    %262 = vsyncpa [#allocation3], 1
    %263 = vsyncpa [#allocation6], 1
    %264 = vsyncpa [#allocation4], 1

// kernel: tpu_custom_call.1
$region0: #{tpu_custom_call.1}
  #allocation0 [shape = 'u32[]', space=smem, size = 0x4, offset = 0x4, fixed_abs, tag = 'smem constant byte address 0x4 - core index']
  #allocation1 [shape = 'u32[144,128]{1,0:T(1,128)}', space=vmem, size = 0x12000, scoped, tag = 'internal scratch']
  %s0 = inlined_call_operand.hbm [shape: f32[8,128], index: 0, kind: input, shape index: {}]
  %s1 = inlined_call_operand.hbm [shape: f32[128,128], index: 1, kind: input, shape index: {}]
  %s2 = inlined_call_operand.vmem [shape: f32[1,128], index: 2, kind: input, shape index: {}]
  %s3 = inlined_call_operand.hbm [shape: f32[128,128], index: 3, kind: input, shape index: {}]
  %s4 = inlined_call_operand.vmem [shape: f32[1,128], index: 4, kind: input, shape index: {}]
  %s5 = inlined_call_operand.hbm [shape: f32[8,128], index: 5, kind: output, shape index: {}]
  %s6 = sld [smem:[#allocation0]]
  $region42: #{tpu_custom_call.1} parent=0
    _
  %s8 = ssub.s32 1, %s6
  %s9 = scalar_select 0, %s8, %s6
  $region1: #{tpu_custom_call.1} parent=0
    #allocation2 [shape = 'u8[4096]{0}', space=vmem, size = 0x1000, scoped, tag = 'input window, operand 0, single buffered']
    #allocation3 [shape = 's32[1]{0}', space=sflag, size = 0x4, scoped, tag = 'scoped memory for tpu_custom_call.1']
    #allocation4 [shape = 's32[1]{0}', space=sflag, size = 0x4, scoped, tag = 'scoped memory for tpu_custom_call.1']
    #allocation5 [shape = 'u8[65536]{0}', space=vmem, size = 0x10000, scoped, tag = 'input window, operand 1, single buffered']
    #allocation6 [shape = 's32[1]{0}', space=sflag, size = 0x4, scoped, tag = 'scoped memory for tpu_custom_call.1']
    #allocation7 [shape = 'u8[65536]{0}', space=vmem, size = 0x10000, scoped, tag = 'input window, operand 3, single buffered']
    #allocation8 [shape = 'u8[4096]{0}', space=vmem, size = 0x1000, scoped, tag = 'output window, operand 0, single buffered']
    %10 = vsyncpa [#allocation3], 0
    %11 = vsyncpa [#allocation6], 0
    %12 = vsyncpa [#allocation4], 0
    // Predicated region
    $region2: #{tpu_custom_call.1} parent=1 // pred_check
      _
    $region3: #{tpu_custom_call.1} parent=1 // pred_check_branch
      %14 = sbr.rel (0) target = $region5
    $region4: #{tpu_custom_call.1} parent=1 // pred_region
      %s16 = ssub.s32 128, 128
      %17 = vsyncadd [#allocation3], %s16
      %s19 = sshll.u32 [#allocation2], 4
      %s20 = int_to_ptr.vmem [resolvable:$true] %s19
      %22 = dma.hbm_to_vmem [thread:$0]  %s0, 128, %s20, [#allocation3]
    $region5: #{tpu_custom_call.1} parent=1 // pred_fallthru
      _
    // Predicated region
    $region6: #{tpu_custom_call.1} parent=1 // pred_check
      _
    $region7: #{tpu_custom_call.1} parent=1 // pred_check_branch
      %24 = sbr.rel (0) target = $region9
    $region8: #{tpu_custom_call.1} parent=1 // pred_region
      %s26 = ssub.s32 2048, 2048
      %27 = vsyncadd [#allocation6], %s26
      %s28 = sshll.u32 [#allocation5], 4
      %s29 = int_to_ptr.vmem [resolvable:$true] %s28
      %34 = dma.hbm_to_vmem [thread:$0]  %s1, 2048, %s29, [#allocation6], 128, 128, 8
    $region9: #{tpu_custom_call.1} parent=1 // pred_fallthru
      _
    // Predicated region
    $region10: #{tpu_custom_call.1} parent=1 // pred_check
      _
    $region11: #{tpu_custom_call.1} parent=1 // pred_check_branch
      %36 = sbr.rel (0) target = $region13
    $region12: #{tpu_custom_call.1} parent=1 // pred_region
      _
    $region13: #{tpu_custom_call.1} parent=1 // pred_fallthru
      _
    // Predicated region
    $region14: #{tpu_custom_call.1} parent=1 // pred_check
      _
    $region15: #{tpu_custom_call.1} parent=1 // pred_check_branch
      %38 = sbr.rel (0) target = $region17
    $region16: #{tpu_custom_call.1} parent=1 // pred_region
      %s40 = ssub.s32 2048, 2048
      %41 = vsyncadd [#allocation6], %s40
      %s42 = sshll.u32 [#allocation7], 4
      %s43 = int_to_ptr.vmem [resolvable:$true] %s42
      %48 = dma.hbm_to_vmem [thread:$0]  %s3, 2048, %s43, [#allocation6], 128, 128, 8
    $region17: #{tpu_custom_call.1} parent=1 // pred_fallthru
      _
    // Predicated region
    $region18: #{tpu_custom_call.1} parent=1 // pred_check
      _
    $region19: #{tpu_custom_call.1} parent=1 // pred_check_branch
      %50 = sbr.rel (0) target = $region21
    $region20: #{tpu_custom_call.1} parent=1 // pred_region
      _
    $region21: #{tpu_custom_call.1} parent=1 // pred_fallthru
      _
    // Predicated region
    $region22: #{tpu_custom_call.1} parent=1 // pred_check
      _
    $region23: #{tpu_custom_call.1} parent=1 // pred_check_branch
      %52 = sbr.rel (0) target = $region25
    $region24: #{tpu_custom_call.1} parent=1 // pred_region
      %53 = dma.done [#allocation3], 128
    $region25: #{tpu_custom_call.1} parent=1 // pred_fallthru
      _
    // Predicated region
    $region26: #{tpu_custom_call.1} parent=1 // pred_check
      _
    $region27: #{tpu_custom_call.1} parent=1 // pred_check_branch
      %55 = sbr.rel (0) target = $region29
    $region28: #{tpu_custom_call.1} parent=1 // pred_region
      %56 = dma.done [#allocation6], 2048
    $region29: #{tpu_custom_call.1} parent=1 // pred_fallthru
      _
    // Predicated region
    $region30: #{tpu_custom_call.1} parent=1 // pred_check
      _
    $region31: #{tpu_custom_call.1} parent=1 // pred_check_branch
      %58 = sbr.rel (0) target = $region33
    $region32: #{tpu_custom_call.1} parent=1 // pred_region
      %59 = dma.done [#allocation6], 2048
    $region33: #{tpu_custom_call.1} parent=1 // pred_fallthru
      _
    %v60 = vld [vmem:[#allocation2] sm:$0xff]
    %v61 = vld [vmem:[#allocation5] sm:$0xff]
    %v62 = vld [vmem:[#allocation5 + $0x8] sm:$0xff]
    %v63 = vld [vmem:[#allocation5 + $0x10] sm:$0xff]
    %v64 = vld [vmem:[#allocation5 + $0x18] sm:$0xff]
    %v65 = vld [vmem:[#allocation5 + $0x20] sm:$0xff]
    %v66 = vld [vmem:[#allocation5 + $0x28] sm:$0xff]
    %v67 = vld [vmem:[#allocation5 + $0x30] sm:$0xff]
    %v68 = vld [vmem:[#allocation5 + $0x38] sm:$0xff]
    %v69 = vld [vmem:[#allocation5 + $0x40] sm:$0xff]
    %v70 = vld [vmem:[#allocation5 + $0x48] sm:$0xff]
    %v71 = vld [vmem:[#allocation5 + $0x50] sm:$0xff]
    %v72 = vld [vmem:[#allocation5 + $0x58] sm:$0xff]
    %v73 = vld [vmem:[#allocation5 + $0x60] sm:$0xff]
    %v74 = vld [vmem:[#allocation5 + $0x68] sm:$0xff]
    %v75 = vld [vmem:[#allocation5 + $0x70] sm:$0xff]
    %v76 = vld [vmem:[#allocation5 + $0x78] sm:$0xff]
    %v77 = vld [vmem:[%s2] sm:$0x1]
    %v79 = vlaneseq
    %v80 = vshrl.u32 %v79, 7
    %v81 = vsub.s32 0, %v80
    %v82 = vrot.slane %v77, %v81
    %84 = vmatprep.subr.mxu0 0.0
    %85 = vmatpush1.msra.mxu0 %v76
    %86 = vmatprep.subr.mxu0 0.0
    %87 = vmatpush1.msra.mxu0 %v75
    %88 = vmatprep.subr.mxu0 0.0
    %89 = vmatpush1.msra.mxu0 %v74
    %90 = vmatprep.subr.mxu0 0.0
    %91 = vmatpush1.msra.mxu0 %v73
    %92 = vmatprep.subr.mxu0 0.0
    %93 = vmatpush1.msra.mxu0 %v72
    %94 = vmatprep.subr.mxu0 0.0
    %95 = vmatpush1.msra.mxu0 %v71
    %96 = vmatprep.subr.mxu0 0.0
    %97 = vmatpush1.msra.mxu0 %v70
    %98 = vmatprep.subr.mxu0 0.0
    %99 = vmatpush1.msra.mxu0 %v69
    %100 = vmatprep.subr.mxu0 0.0
    %101 = vmatpush1.msra.mxu0 %v68
    %102 = vmatprep.subr.mxu0 0.0
    %103 = vmatpush1.msra.mxu0 %v67
    %104 = vmatprep.subr.mxu0 0.0
    %105 = vmatpush1.msra.mxu0 %v66
    %106 = vmatprep.subr.mxu0 0.0
    %107 = vmatpush1.msra.mxu0 %v65
    %108 = vmatprep.subr.mxu0 0.0
    %109 = vmatpush1.msra.mxu0 %v64
    %110 = vmatprep.subr.mxu0 0.0
    %111 = vmatpush1.msra.mxu0 %v63
    %112 = vmatprep.subr.mxu0 0.0
    %113 = vmatpush1.msra.mxu0 %v62
    %114 = vmatprep.subr.mxu0 0.0
    %115 = vmatpush1.msra.mxu0 %v61
    %116 = vmatprep.subr.mxu0 0.0
    %117 = vmatpush2.msra.mxu0 0.0
    %118 = vmatprep.subr.mxu0 0.0
    %119 = vmatpush2.msra.mxu0 0.0
    %120 = vmatprep.subr.mxu0 0.0
    %121 = vmatpush2.msra.mxu0 0.0
    %122 = vmatprep.subr.mxu0 0.0
    %123 = vmatpush2.msra.mxu0 0.0
    %124 = vmatprep.subr.mxu0 0.0
    %125 = vmatpush2.msra.mxu0 0.0
    %126 = vmatprep.subr.mxu0 0.0
    %127 = vmatpush2.msra.mxu0 0.0
    %128 = vmatprep.subr.mxu0 0.0
    %129 = vmatpush2.msra.mxu0 0.0
    %130 = vmatprep.subr.mxu0 0.0
    %131 = vmatpush2.msra.mxu0 0.0
    %132 = vmatprep.subr.mxu0 0.0
    %133 = vmatpush2.msra.mxu0 0.0
    %134 = vmatprep.subr.mxu0 0.0
    %135 = vmatpush2.msra.mxu0 0.0
    %136 = vmatprep.subr.mxu0 0.0
    %137 = vmatpush2.msra.mxu0 0.0
    %138 = vmatprep.subr.mxu0 0.0
    %139 = vmatpush2.msra.mxu0 0.0
    %140 = vmatprep.subr.mxu0 0.0
    %141 = vmatpush2.msra.mxu0 0.0
    %142 = vmatprep.subr.mxu0 0.0
    %143 = vmatpush2.msra.mxu0 0.0
    %144 = vmatprep.subr.mxu0 0.0
    %145 = vmatpush2.msra.mxu0 0.0
    %146 = vmatprep.subr.mxu0 0.0
    %147 = vmatpush2.msra.mxu0 0.0
    %148 = vmatprep.mubr.f32.mxu0 0.0
    %149 = vmatmul.mubr.f32.gmra.mxu0 %v60
    %v150 = vpop.f32.mrf.mxu0
    %v151 = vadd.f32 %v82, %v150
    %v152 = vpop.f32.mrf.mxu0
    %153 = vdwg.mxu0
    %v154 = vtanh.pop %v151
    %v155 = vld [vmem:[#allocation7] sm:$0xff]
    %v156 = vld [vmem:[#allocation7 + $0x8] sm:$0xff]
    %v157 = vld [vmem:[#allocation7 + $0x10] sm:$0xff]
    %v158 = vld [vmem:[#allocation7 + $0x18] sm:$0xff]
    %v159 = vld [vmem:[#allocation7 + $0x20] sm:$0xff]
    %v160 = vld [vmem:[#allocation7 + $0x28] sm:$0xff]
    %v161 = vld [vmem:[#allocation7 + $0x30] sm:$0xff]
    %v162 = vld [vmem:[#allocation7 + $0x38] sm:$0xff]
    %v163 = vld [vmem:[#allocation7 + $0x40] sm:$0xff]
    %v164 = vld [vmem:[#allocation7 + $0x48] sm:$0xff]
    %v165 = vld [vmem:[#allocation7 + $0x50] sm:$0xff]
    %v166 = vld [vmem:[#allocation7 + $0x58] sm:$0xff]
    %v167 = vld [vmem:[#allocation7 + $0x60] sm:$0xff]
    %v168 = vld [vmem:[#allocation7 + $0x68] sm:$0xff]
    %v169 = vld [vmem:[#allocation7 + $0x70] sm:$0xff]
    %v170 = vld [vmem:[#allocation7 + $0x78] sm:$0xff]
    %v171 = vld [vmem:[%s4] sm:$0x1]
    %v173 = vlaneseq
    %v174 = vshrl.u32 %v173, 7
    %v175 = vsub.s32 0, %v174
    %v176 = vrot.slane %v171, %v175
    %178 = vmatprep.subr.mxu0 0.0
    %179 = vmatpush1.msra.mxu0 %v170
    %180 = vmatprep.subr.mxu0 0.0
    %181 = vmatpush1.msra.mxu0 %v169
    %182 = vmatprep.subr.mxu0 0.0
    %183 = vmatpush1.msra.mxu0 %v168
    %184 = vmatprep.subr.mxu0 0.0
    %185 = vmatpush1.msra.mxu0 %v167
    %186 = vmatprep.subr.mxu0 0.0
    %187 = vmatpush1.msra.mxu0 %v166
    %188 = vmatprep.subr.mxu0 0.0
    %189 = vmatpush1.msra.mxu0 %v165
    %190 = vmatprep.subr.mxu0 0.0
    %191 = vmatpush1.msra.mxu0 %v164
    %192 = vmatprep.subr.mxu0 0.0
    %193 = vmatpush1.msra.mxu0 %v163
    %194 = vmatprep.subr.mxu0 0.0
    %195 = vmatpush1.msra.mxu0 %v162
    %196 = vmatprep.subr.mxu0 0.0
    %197 = vmatpush1.msra.mxu0 %v161
    %198 = vmatprep.subr.mxu0 0.0
    %199 = vmatpush1.msra.mxu0 %v160
    %200 = vmatprep.subr.mxu0 0.0
    %201 = vmatpush1.msra.mxu0 %v159
    %202 = vmatprep.subr.mxu0 0.0
    %203 = vmatpush1.msra.mxu0 %v158
    %204 = vmatprep.subr.mxu0 0.0
    %205 = vmatpush1.msra.mxu0 %v157
    %206 = vmatprep.subr.mxu0 0.0
    %207 = vmatpush1.msra.mxu0 %v156
    %208 = vmatprep.subr.mxu0 0.0
    %209 = vmatpush1.msra.mxu0 %v155
    %210 = vmatprep.subr.mxu0 0.0
    %211 = vmatpush2.msra.mxu0 0.0
    %212 = vmatprep.subr.mxu0 0.0
    %213 = vmatpush2.msra.mxu0 0.0
    %214 = vmatprep.subr.mxu0 0.0
    %215 = vmatpush2.msra.mxu0 0.0
    %216 = vmatprep.subr.mxu0 0.0
    %217 = vmatpush2.msra.mxu0 0.0
    %218 = vmatprep.subr.mxu0 0.0
    %219 = vmatpush2.msra.mxu0 0.0
    %220 = vmatprep.subr.mxu0 0.0
    %221 = vmatpush2.msra.mxu0 0.0
    %222 = vmatprep.subr.mxu0 0.0
    %223 = vmatpush2.msra.mxu0 0.0
    %224 = vmatprep.subr.mxu0 0.0
    %225 = vmatpush2.msra.mxu0 0.0
    %226 = vmatprep.subr.mxu0 0.0
    %227 = vmatpush2.msra.mxu0 0.0
    %228 = vmatprep.subr.mxu0 0.0
    %229 = vmatpush2.msra.mxu0 0.0
    %230 = vmatprep.subr.mxu0 0.0
    %231 = vmatpush2.msra.mxu0 0.0
    %232 = vmatprep.subr.mxu0 0.0
    %233 = vmatpush2.msra.mxu0 0.0
    %234 = vmatprep.subr.mxu0 0.0
    %235 = vmatpush2.msra.mxu0 0.0
    %236 = vmatprep.subr.mxu0 0.0
    %237 = vmatpush2.msra.mxu0 0.0
    %238 = vmatprep.subr.mxu0 0.0
    %239 = vmatpush2.msra.mxu0 0.0
    %240 = vmatprep.subr.mxu0 0.0
    %241 = vmatpush2.msra.mxu0 0.0
    %242 = vmatprep.mubr.f32.mxu0 0.0
    %243 = vmatmul.mubr.f32.gmra.mxu0 %v154
    %v244 = vpop.f32.mrf.mxu0
    %v245 = vadd.f32 %v176, %v244
    %v246 = vpop.f32.mrf.mxu0
    %247 = vdwg.mxu0
    %248 = vst [vmem:[#allocation8] sm:$0xff] %v245
    // Predicated region
    $region34: #{tpu_custom_call.1} parent=1 // pred_check
      _
    $region35: #{tpu_custom_call.1} parent=1 // pred_check_branch
      %250 = sbr.rel (0) target = $region37
    $region36: #{tpu_custom_call.1} parent=1 // pred_region
      %s252 = ssub.s32 128, 128
      %253 = vsyncadd [#allocation4], %s252
      %s255 = sshll.u32 [#allocation8], 4
      %s256 = int_to_ptr.vmem [resolvable:$true] %s255
      %258 = dma.vmem_to_hbm [thread:$0]  %s256, 128, %s5, [#allocation4]
    $region37: #{tpu_custom_call.1} parent=1 // pred_fallthru
      _
    // Predicated region
    $region38: #{tpu_custom_call.1} parent=1 // pred_check
      _
    $region39: #{tpu_custom_call.1} parent=1 // pred_check_branch
      %260 = sbr.rel (0) target = $region41
    $region40: #{tpu_custom_call.1} parent=1 // pred_region
      %261 = dma.done [#allocation4], 128
    $region41: #{tpu_custom_call.1} parent=1 // pred_fallthru
      _
    %262 = vsyncpa [#allocation3], 1
    %263 = vsyncpa [#allocation6], 1
    %264 = vsyncpa [#allocation4], 1

</llo_original>
